<compile_context>
chip_gen: v6e
topology: v6e:2x2x1
jax: 0.10.0
libtpu: 0.0.40
codegen_flags: <defaults>
</compile_context>

<pallas_src>
import functools

import jax
import jax.numpy as jnp
from jax.experimental import pallas as pl
from jax.experimental.pallas import tpu as pltpu


DEFAULT_TILE_B = 512


def qnet_kernel(x_ref, w1_ref, b1_ref, w2_ref, b2_ref, w3_ref, b3_ref, o_ref):
    # x tile: (TILE_B, 30) f32 — no wrapper-side pad/cast; unaligned K handled
    # by the Mosaic matmul lowering. Layer 1 stays f32 (tiny FLOPs).
    x = x_ref[...]
    h1 = jnp.dot(x, w1_ref[...], preferred_element_type=jnp.float32)
    h1 = jnp.maximum(h1 + b1_ref[...], 0.0)

    # Layer 2: (TB, 128) @ (128, 64), bf16 operands, f32 accumulation.
    h2 = jnp.dot(h1.astype(jnp.bfloat16), w2_ref[...],
                 preferred_element_type=jnp.float32)
    h2 = jnp.maximum(h2 + b2_ref[...], 0.0)

    # Layer 3: (TB, 64) @ (64, 10) -> narrow f32 store (40 B/row, contiguous
    # per block since the block spans the full last dim).
    o_ref[...] = (
        jnp.dot(h2.astype(jnp.bfloat16), w3_ref[...],
                preferred_element_type=jnp.float32)
        + b3_ref[...]
    )


@functools.partial(jax.jit, static_argnames=("tile_b",))
def qnetwork_forward(x, w1, b1, w2, b2, w3, b3, tile_b=DEFAULT_TILE_B):
    B, d_in = x.shape
    h1_dim = w1.shape[1]
    h2_dim = w2.shape[1]
    out_dim = w3.shape[1]

    # --- batch tiling --------------------------------------------------------
    # Clamp to the batch for small inputs; for B >= 16 guarantee >= 2 grid
    # steps so the "parallel" batch axis can feed both v7x TensorCores, then
    # re-split evenly (multiple of 8 rows) to minimise batch padding.
    tile_b = max(8, min(tile_b, pl.cdiv(B, 8) * 8))
    n_tiles = pl.cdiv(B, tile_b)
    if B >= 16:
        n_tiles = max(n_tiles, 2)
    tile_b = max(8, pl.cdiv(pl.cdiv(B, n_tiles), 8) * 8)
    Bp = n_tiles * tile_b

    # x stays f32 / 30-wide; only cheap batch-row zero-padding when needed.
    x_p = jnp.pad(x, ((0, Bp - B), (0, 0))) if Bp != B else x

    # One-time parameter casts (tiny; in production cast once outside jit).
    w1_p = w1.astype(jnp.float32)
    b1_p = b1.reshape(1, h1_dim).astype(jnp.float32)
    w2_p = w2.astype(jnp.bfloat16)
    b2_p = b2.reshape(1, h2_dim).astype(jnp.float32)
    w3_p = w3.astype(jnp.bfloat16)
    b3_p = b3.reshape(1, out_dim).astype(jnp.float32)

    # Weights/biases: full-array blocks with constant index_maps -> fetched
    # once, VMEM-resident across all batch tiles.
    def const_spec(shape):
        return pl.BlockSpec(shape, lambda i: (0, 0))

    out = pl.pallas_call(
        qnet_kernel,
        out_shape=jax.ShapeDtypeStruct((Bp, out_dim), jnp.float32),
        grid=(n_tiles,),
        in_specs=[
            pl.BlockSpec((tile_b, d_in), lambda i: (i, 0)),   # x tile
            const_spec((d_in, h1_dim)),                       # w1 (f32)
            const_spec((1, h1_dim)),                          # b1
            const_spec((h1_dim, h2_dim)),                     # w2 (bf16)
            const_spec((1, h2_dim)),                          # b2
            const_spec((h2_dim, out_dim)),                    # w3 (bf16)
            const_spec((1, out_dim)),                         # b3
        ],
        out_specs=pl.BlockSpec((tile_b, out_dim), lambda i: (i, 0)),
        compiler_params=pltpu.CompilerParams(
            dimension_semantics=("parallel",),   # shard batch across TCs (v7x)
        ),
    )(x_p, w1_p, b1_p, w2_p, b2_p, w3_p, b3_p)

    # Only batch padding (if any) remains to slice off; it is a no-op for
    # aligned batches and cheap otherwise (40 B/row output).
    return out[:B] if Bp != B else out


def init_params(key, state_dim=30, hidden1=128, hidden2=64, output_dim=10):
    """Deterministic init matching PyTorch nn.Linear shapes, stored as (in, out)."""
    ks = jax.random.split(key, 6)

    def uniform(k, shape, fan_in):
        bound = 1.0 / jnp.sqrt(fan_in)
        return jax.random.uniform(k, shape, jnp.float32, -bound, bound)

    w1 = uniform(ks[0], (state_dim, hidden1), state_dim)
    b1 = uniform(ks[1], (1, hidden1), state_dim)
    w2 = uniform(ks[2], (hidden1, hidden2), hidden1)
    b2 = uniform(ks[3], (1, hidden2), hidden1)
    w3 = uniform(ks[4], (hidden2, output_dim), hidden2)
    b3 = uniform(ks[5], (1, output_dim), hidden2)
    return w1, b1, w2, b2, w3, b3


def reference_forward(x, w1, b1, w2, b2, w3, b3):
    """Pure-JAX f32 reference (PyTorch-equivalent forward)."""
    h1 = jnp.maximum(jnp.dot(x, w1) + b1, 0.0)
    h2 = jnp.maximum(jnp.dot(h1, w2) + b2, 0.0)
    return jnp.dot(h2, w3) + b3


if __name__ == "__main__":
    key = jax.random.PRNGKey(0)
    k_params, k_x = jax.random.split(key)

    state_dim, output_dim = 30, 10
    batch = 8

    params = init_params(k_params, state_dim=state_dim, output_dim=output_dim)
    x = jax.random.normal(k_x, (batch, state_dim), dtype=jnp.float32)

    out = qnetwork_forward(x, *params)
    out = jax.block_until_ready(out)
    assert out.shape == (batch, output_dim)

    # Check against the full-f32 PyTorch-equivalent forward; tolerance covers
    # the bf16 MXU operands used for layers 2/3 (accumulation stays f32).
    ref_f32 = reference_forward(x, *params)
    assert jnp.allclose(out, ref_f32, atol=5e-2, rtol=5e-2)

    print("KERNEL_OK")
</pallas_src>

<mosaic_0001>
module attributes {stable_mosaic.version = 11 : i64} {
  func.func @qnet_kernel(%arg0: i32, %arg1: memref<8x30xf32, #tpu.memory_space<vmem>>, %arg2: memref<30x128xf32, #tpu.memory_space<vmem>>, %arg3: memref<1x128xf32, #tpu.memory_space<vmem>>, %arg4: memref<128x64xbf16, #tpu.memory_space<vmem>>, %arg5: memref<1x64xf32, #tpu.memory_space<vmem>>, %arg6: memref<64x10xbf16, #tpu.memory_space<vmem>>, %arg7: memref<1x10xf32, #tpu.memory_space<vmem>>, %arg8: memref<8x10xf32, #tpu.memory_space<vmem>>) attributes {dimension_semantics = [#tpu.dimension_semantics<parallel>], iteration_bounds = array<i64: 1>, scalar_prefetch = 0 : i64, scratch_operands = 0 : i64, tpu.core_type = #tpu.core_type<tc>, window_params = [{transform_indices = @transform_0, window_bounds = array<i64: 8, 30>}, {pipeline_mode = #tpu.pipeline_mode<synchronous>, transform_indices = @transform_1, window_bounds = array<i64: 30, 128>}, {pipeline_mode = #tpu.pipeline_mode<synchronous>, transform_indices = @transform_2, window_bounds = array<i64: 1, 128>}, {pipeline_mode = #tpu.pipeline_mode<synchronous>, transform_indices = @transform_3, window_bounds = array<i64: 128, 64>}, {pipeline_mode = #tpu.pipeline_mode<synchronous>, transform_indices = @transform_4, window_bounds = array<i64: 1, 64>}, {pipeline_mode = #tpu.pipeline_mode<synchronous>, transform_indices = @transform_5, window_bounds = array<i64: 64, 10>}, {pipeline_mode = #tpu.pipeline_mode<synchronous>, transform_indices = @transform_6, window_bounds = array<i64: 1, 10>}, {transform_indices = @transform_7, window_bounds = array<i64: 8, 10>}]} {
    %c0 = arith.constant 0 : index
    %c0_0 = arith.constant 0 : index
    %0 = vector.load %arg1[%c0, %c0_0] : memref<8x30xf32, #tpu.memory_space<vmem>>, vector<8x30xf32>
    %c0_1 = arith.constant 0 : index
    %c0_2 = arith.constant 0 : index
    %1 = vector.load %arg2[%c0_1, %c0_2] : memref<30x128xf32, #tpu.memory_space<vmem>>, vector<30x128xf32>
    %cst = arith.constant dense<0.000000e+00> : vector<8x128xf32>
    %2 = tpu.matmul %0, %1, %cst {dimension_numbers = #tpu.dot_dimension_numbers<[1], [0], [0], [1], [0, 0, 1, 1], [], []>} : vector<8x30xf32>, vector<30x128xf32>, vector<8x128xf32> -> vector<8x128xf32>
    %c0_3 = arith.constant 0 : index
    %c0_4 = arith.constant 0 : index
    %3 = vector.load %arg3[%c0_3, %c0_4] : memref<1x128xf32, #tpu.memory_space<vmem>>, vector<1x128xf32>
    %4 = vector.broadcast %3 : vector<1x128xf32> to vector<8x128xf32>
    %5 = arith.addf %2, %4 : vector<8x128xf32>
    %cst_5 = arith.constant 0.000000e+00 : f32
    %6 = vector.broadcast %cst_5 : f32 to vector<8x128xf32>
    %7 = arith.maximumf %5, %6 : vector<8x128xf32>
    %8 = arith.truncf %7 : vector<8x128xf32> to vector<8x128xbf16>
    %c0_6 = arith.constant 0 : index
    %c0_7 = arith.constant 0 : index
    %9 = vector.load %arg4[%c0_6, %c0_7] : memref<128x64xbf16, #tpu.memory_space<vmem>>, vector<128x64xbf16>
    %cst_8 = arith.constant dense<0.000000e+00> : vector<8x64xf32>
    %10 = tpu.matmul %8, %9, %cst_8 {dimension_numbers = #tpu.dot_dimension_numbers<[1], [0], [0], [1], [0, 0, 1, 1], [], []>} : vector<8x128xbf16>, vector<128x64xbf16>, vector<8x64xf32> -> vector<8x64xf32>
    %c0_9 = arith.constant 0 : index
    %c0_10 = arith.constant 0 : index
    %11 = vector.load %arg5[%c0_9, %c0_10] : memref<1x64xf32, #tpu.memory_space<vmem>>, vector<1x64xf32>
    %12 = vector.broadcast %11 : vector<1x64xf32> to vector<8x64xf32>
    %13 = arith.addf %10, %12 : vector<8x64xf32>
    %cst_11 = arith.constant 0.000000e+00 : f32
    %14 = vector.broadcast %cst_11 : f32 to vector<8x64xf32>
    %15 = arith.maximumf %13, %14 : vector<8x64xf32>
    %16 = arith.truncf %15 : vector<8x64xf32> to vector<8x64xbf16>
    %c0_12 = arith.constant 0 : index
    %c0_13 = arith.constant 0 : index
    %17 = vector.load %arg6[%c0_12, %c0_13] : memref<64x10xbf16, #tpu.memory_space<vmem>>, vector<64x10xbf16>
    %cst_14 = arith.constant dense<0.000000e+00> : vector<8x10xf32>
    %18 = tpu.matmul %16, %17, %cst_14 {dimension_numbers = #tpu.dot_dimension_numbers<[1], [0], [0], [1], [0, 0, 1, 1], [], []>} : vector<8x64xbf16>, vector<64x10xbf16>, vector<8x10xf32> -> vector<8x10xf32>
    %c0_15 = arith.constant 0 : index
    %c0_16 = arith.constant 0 : index
    %19 = vector.load %arg7[%c0_15, %c0_16] : memref<1x10xf32, #tpu.memory_space<vmem>>, vector<1x10xf32>
    %20 = vector.broadcast %19 : vector<1x10xf32> to vector<8x10xf32>
    %21 = arith.addf %18, %20 : vector<8x10xf32>
    %c0_17 = arith.constant 0 : index
    %c0_18 = arith.constant 0 : index
    %22 = vector.load %arg8[%c0_17, %c0_18] : memref<8x10xf32, #tpu.memory_space<vmem>>, vector<8x10xf32>
    tpu.vector_store %arg8[%c0_17, %c0_18], %21 {strides = array<i32>} : memref<8x10xf32, #tpu.memory_space<vmem>>, vector<8x10xf32>,
    return
  }
  func.func @transform_0(%arg0: i32) -> (i32, i32) {
    %c0_i32 = arith.constant 0 : i32
    %c0_i32_0 = arith.constant 0 : i32
    return %arg0, %c0_i32 : i32, i32
  }
  func.func @transform_1(%arg0: i32) -> (i32, i32) {
    %c0_i32 = arith.constant 0 : i32
    %c0_i32_0 = arith.constant 0 : i32
    %c0_i32_1 = arith.constant 0 : i32
    return %c0_i32, %c0_i32_0 : i32, i32
  }
  func.func @transform_2(%arg0: i32) -> (i32, i32) {
    %c0_i32 = arith.constant 0 : i32
    %c0_i32_0 = arith.constant 0 : i32
    %c0_i32_1 = arith.constant 0 : i32
    return %c0_i32, %c0_i32_0 : i32, i32
  }
  func.func @transform_3(%arg0: i32) -> (i32, i32) {
    %c0_i32 = arith.constant 0 : i32
    %c0_i32_0 = arith.constant 0 : i32
    %c0_i32_1 = arith.constant 0 : i32
    return %c0_i32, %c0_i32_0 : i32, i32
  }
  func.func @transform_4(%arg0: i32) -> (i32, i32) {
    %c0_i32 = arith.constant 0 : i32
    %c0_i32_0 = arith.constant 0 : i32
    %c0_i32_1 = arith.constant 0 : i32
    return %c0_i32, %c0_i32_0 : i32, i32
  }
  func.func @transform_5(%arg0: i32) -> (i32, i32) {
    %c0_i32 = arith.constant 0 : i32
    %c0_i32_0 = arith.constant 0 : i32
    %c0_i32_1 = arith.constant 0 : i32
    return %c0_i32, %c0_i32_0 : i32, i32
  }
  func.func @transform_6(%arg0: i32) -> (i32, i32) {
    %c0_i32 = arith.constant 0 : i32
    %c0_i32_0 = arith.constant 0 : i32
    %c0_i32_1 = arith.constant 0 : i32
    return %c0_i32, %c0_i32_0 : i32, i32
  }
  func.func @transform_7(%arg0: i32) -> (i32, i32) {
    %c0_i32 = arith.constant 0 : i32
    %c0_i32_0 = arith.constant 0 : i32
    return %arg0, %c0_i32 : i32, i32
  }
}

</mosaic_0001>

<llo_original>
// kernel: qnetwork_forward.1
$region0: #{qnetwork_forward.1}
  #allocation0 [shape = 'u32[]', space=smem, size = 0x4, offset = 0x4, fixed_abs, tag = 'smem constant byte address 0x4 - core index']
  #allocation1 [shape = 'u32[144,128]{1,0:T(1,128)}', space=vmem, size = 0x12000, scoped, tag = 'internal scratch']
  %s0 = inlined_call_operand.vmem [shape: f32[8,30], index: 0, kind: input, shape index: {}]
  %s1 = inlined_call_operand.vmem [shape: f32[30,128], index: 1, kind: input, shape index: {}]
  %s2 = inlined_call_operand.vmem [shape: f32[1,128], index: 2, kind: input, shape index: {}]
  %s3 = inlined_call_operand.vmem [shape: bf16[128,64], index: 3, kind: input, shape index: {}]
  %s4 = inlined_call_operand.vmem [shape: f32[1,64], index: 4, kind: input, shape index: {}]
  %s5 = inlined_call_operand.vmem [shape: bf16[64,10], index: 5, kind: input, shape index: {}]
  %s6 = inlined_call_operand.vmem [shape: f32[1,10], index: 6, kind: input, shape index: {}]
  %s7 = inlined_call_operand.hbm [shape: f32[8,10], index: 7, kind: output, shape index: {}]
  %s8 = sld [smem:[#allocation0]]
  $region38: #{qnetwork_forward.1} parent=0
    _
  %s10 = ssub.s32 1, %s8
  %s11 = scalar_select 0, %s10, %s8
  $region1: #{qnetwork_forward.1} parent=0
    #allocation2 [shape = 'u8[4096]{0}', space=vmem, size = 0x1000, scoped, tag = 'output window, operand 0, single buffered']
    #allocation3 [shape = 's32[1]{0}', space=sflag, size = 0x4, scoped, tag = 'scoped memory for qnetwork_forward.1']
    %12 = vsyncpa [#allocation3], 0
    // Predicated region
    $region2: #{qnetwork_forward.1} parent=1 // pred_check
      _
    $region3: #{qnetwork_forward.1} parent=1 // pred_check_branch
      %14 = sbr.rel (0) target = $region5
    $region4: #{qnetwork_forward.1} parent=1 // pred_region
      _
    $region5: #{qnetwork_forward.1} parent=1 // pred_fallthru
      _
    // Predicated region
    $region6: #{qnetwork_forward.1} parent=1 // pred_check
      _
    $region7: #{qnetwork_forward.1} parent=1 // pred_check_branch
      %16 = sbr.rel (0) target = $region9
    $region8: #{qnetwork_forward.1} parent=1 // pred_region
      _
    $region9: #{qnetwork_forward.1} parent=1 // pred_fallthru
      _
    // Predicated region
    $region10: #{qnetwork_forward.1} parent=1 // pred_check
      _
    $region11: #{qnetwork_forward.1} parent=1 // pred_check_branch
      %18 = sbr.rel (0) target = $region13
    $region12: #{qnetwork_forward.1} parent=1 // pred_region
      _
    $region13: #{qnetwork_forward.1} parent=1 // pred_fallthru
      _
    // Predicated region
    $region14: #{qnetwork_forward.1} parent=1 // pred_check
      _
    $region15: #{qnetwork_forward.1} parent=1 // pred_check_branch
      %20 = sbr.rel (0) target = $region17
    $region16: #{qnetwork_forward.1} parent=1 // pred_region
      _
    $region17: #{qnetwork_forward.1} parent=1 // pred_fallthru
      _
    // Predicated region
    $region18: #{qnetwork_forward.1} parent=1 // pred_check
      _
    $region19: #{qnetwork_forward.1} parent=1 // pred_check_branch
      %22 = sbr.rel (0) target = $region21
    $region20: #{qnetwork_forward.1} parent=1 // pred_region
      _
    $region21: #{qnetwork_forward.1} parent=1 // pred_fallthru
      _
    // Predicated region
    $region22: #{qnetwork_forward.1} parent=1 // pred_check
      _
    $region23: #{qnetwork_forward.1} parent=1 // pred_check_branch
      %24 = sbr.rel (0) target = $region25
    $region24: #{qnetwork_forward.1} parent=1 // pred_region
      _
    $region25: #{qnetwork_forward.1} parent=1 // pred_fallthru
      _
    // Predicated region
    $region26: #{qnetwork_forward.1} parent=1 // pred_check
      _
    $region27: #{qnetwork_forward.1} parent=1 // pred_check_branch
      %26 = sbr.rel (0) target = $region29
    $region28: #{qnetwork_forward.1} parent=1 // pred_region
      _
    $region29: #{qnetwork_forward.1} parent=1 // pred_fallthru
      _
    %v28 = vld [vmem:[%s0] sm:$0xff]
    %v29 = vld [vmem:[%s1] sm:$0xff]
    %v30 = vld [vmem:[%s1 + $0x8] sm:$0xff]
    %v31 = vld [vmem:[%s1 + $0x10] sm:$0xff]
    %v32 = vld [vmem:[%s1 + $0x18] sm:$0x3f]
    %v33 = vld [vmem:[%s2] sm:$0x1]
    %v35 = vlaneseq
    %v36 = vshrl.u32 %v35, 7
    %v37 = vsub.s32 0, %v36
    %v38 = vrot.slane %v33, %v37
    %vm40 = vcmask 244736
    %v42 = vsel %vm40, %v28, 0
    %vm44 = vcmask 1045504
    %v46 = vsel %vm44, %v32, 0
    %48 = vmatprep.subr.mxu0 0.0
    %49 = vmatpush1.msra.mxu0 0.0
    %50 = vmatprep.subr.mxu0 0.0
    %51 = vmatpush1.msra.mxu0 0.0
    %52 = vmatprep.subr.mxu0 0.0
    %53 = vmatpush1.msra.mxu0 0.0
    %54 = vmatprep.subr.mxu0 0.0
    %55 = vmatpush1.msra.mxu0 0.0
    %56 = vmatprep.subr.mxu0 0.0
    %57 = vmatpush1.msra.mxu0 0.0
    %58 = vmatprep.subr.mxu0 0.0
    %59 = vmatpush1.msra.mxu0 0.0
    %60 = vmatprep.subr.mxu0 0.0
    %61 = vmatpush1.msra.mxu0 0.0
    %62 = vmatprep.subr.mxu0 0.0
    %63 = vmatpush1.msra.mxu0 0.0
    %64 = vmatprep.subr.mxu0 0.0
    %65 = vmatpush1.msra.mxu0 0.0
    %66 = vmatprep.subr.mxu0 0.0
    %67 = vmatpush1.msra.mxu0 0.0
    %68 = vmatprep.subr.mxu0 0.0
    %69 = vmatpush1.msra.mxu0 0.0
    %70 = vmatprep.subr.mxu0 0.0
    %71 = vmatpush1.msra.mxu0 0.0
    %72 = vmatprep.subr.mxu0 0.0
    %73 = vmatpush1.msra.mxu0 %v46
    %74 = vmatprep.subr.mxu0 0.0
    %75 = vmatpush1.msra.mxu0 %v31
    %76 = vmatprep.subr.mxu0 0.0
    %77 = vmatpush1.msra.mxu0 %v30
    %78 = vmatprep.subr.mxu0 0.0
    %79 = vmatpush1.msra.mxu0 %v29
    %80 = vmatprep.subr.mxu0 0.0
    %81 = vmatpush2.msra.mxu0 0.0
    %82 = vmatprep.subr.mxu0 0.0
    %83 = vmatpush2.msra.mxu0 0.0
    %84 = vmatprep.subr.mxu0 0.0
    %85 = vmatpush2.msra.mxu0 0.0
    %86 = vmatprep.subr.mxu0 0.0
    %87 = vmatpush2.msra.mxu0 0.0
    %88 = vmatprep.subr.mxu0 0.0
    %89 = vmatpush2.msra.mxu0 0.0
    %90 = vmatprep.subr.mxu0 0.0
    %91 = vmatpush2.msra.mxu0 0.0
    %92 = vmatprep.subr.mxu0 0.0
    %93 = vmatpush2.msra.mxu0 0.0
    %94 = vmatprep.subr.mxu0 0.0
    %95 = vmatpush2.msra.mxu0 0.0
    %96 = vmatprep.subr.mxu0 0.0
    %97 = vmatpush2.msra.mxu0 0.0
    %98 = vmatprep.subr.mxu0 0.0
    %99 = vmatpush2.msra.mxu0 0.0
    %100 = vmatprep.subr.mxu0 0.0
    %101 = vmatpush2.msra.mxu0 0.0
    %102 = vmatprep.subr.mxu0 0.0
    %103 = vmatpush2.msra.mxu0 0.0
    %104 = vmatprep.subr.mxu0 0.0
    %105 = vmatpush2.msra.mxu0 0.0
    %106 = vmatprep.subr.mxu0 0.0
    %107 = vmatpush2.msra.mxu0 0.0
    %108 = vmatprep.subr.mxu0 0.0
    %109 = vmatpush2.msra.mxu0 0.0
    %110 = vmatprep.subr.mxu0 0.0
    %111 = vmatpush2.msra.mxu0 0.0
    %112 = vmatprep.mubr.f32.mxu0 0.0
    %113 = vmatmul.mubr.f32.gmra.mxu0 %v42
    %v114 = vpop.f32.mrf.mxu0
    %v115 = vadd.f32 %v38, %v114
    %v116 = vpop.f32.mrf.mxu0
    %117 = vdwg.mxu0
    %v118 = vmax.f32 %v115, 0.0
    %v119 = vpack.c.bf16 %v118, %v118
    %v120 = vld [vmem:[%s3] sm:$0xf]
    %v121 = vld [vmem:[%s3 + $0x4] sm:$0xf]
    %v122 = vld [vmem:[%s3 + $0x8] sm:$0xf]
    %v123 = vld [vmem:[%s3 + $0xc] sm:$0xf]
    %v124 = vld [vmem:[%s3 + $0x10] sm:$0xf]
    %v125 = vld [vmem:[%s3 + $0x14] sm:$0xf]
    %v126 = vld [vmem:[%s3 + $0x18] sm:$0xf]
    %v127 = vld [vmem:[%s3 + $0x1c] sm:$0xf]
    %v128 = vld [vmem:[%s3 + $0x20] sm:$0xf]
    %v129 = vld [vmem:[%s3 + $0x24] sm:$0xf]
    %v130 = vld [vmem:[%s3 + $0x28] sm:$0xf]
    %v131 = vld [vmem:[%s3 + $0x2c] sm:$0xf]
    %v132 = vld [vmem:[%s3 + $0x30] sm:$0xf]
    %v133 = vld [vmem:[%s3 + $0x34] sm:$0xf]
    %v134 = vld [vmem:[%s3 + $0x38] sm:$0xf]
    %v135 = vld [vmem:[%s3 + $0x3c] sm:$0xf]
    %v136 = vld [vmem:[%s4] sm:$0x1]
    %v138 = vlaneseq
    %v139 = vshrl.u32 %v138, 7
    %v140 = vsub.s32 0, %v139
    %v141 = vrot.slane %v136, %v140
    %v159 = vunpack.c.l.b16 %v120
    %v160 = vunpack.c.l.b16 %v121
    %v161 = vunpack.c.l.b16 %v122
    %v162 = vunpack.c.l.b16 %v123
    %v163 = vunpack.c.l.b16 %v124
    %v164 = vunpack.c.l.b16 %v125
    %v165 = vunpack.c.l.b16 %v126
    %v166 = vunpack.c.l.b16 %v127
    %v167 = vunpack.c.l.b16 %v128
    %v168 = vunpack.c.l.b16 %v129
    %v169 = vunpack.c.l.b16 %v130
    %v170 = vunpack.c.l.b16 %v131
    %v171 = vunpack.c.l.b16 %v132
    %v172 = vunpack.c.l.b16 %v133
    %v173 = vunpack.c.l.b16 %v134
    %v174 = vunpack.c.l.b16 %v135
    %v175 = vpack.c.b16 %v160, %v159
    %v176 = vpack.c.b16 %v162, %v161
    %v177 = vpack.c.b16 %v164, %v163
    %v178 = vpack.c.b16 %v166, %v165
    %v179 = vpack.c.b16 %v168, %v167
    %v180 = vpack.c.b16 %v170, %v169
    %v181 = vpack.c.b16 %v172, %v171
    %v182 = vpack.c.b16 %v174, %v173
    %191 = vmatprep.subr.bf16.mxu0 0
    %192 = vmatpush1.bf16.msra.mxu0 %v182
    %193 = vmatprep.subr.bf16.mxu0 0
    %194 = vmatpush1.bf16.msra.mxu0 %v181
    %195 = vmatprep.subr.bf16.mxu0 0
    %196 = vmatpush1.bf16.msra.mxu0 %v180
    %197 = vmatprep.subr.bf16.mxu0 0
    %198 = vmatpush1.bf16.msra.mxu0 %v179
    %199 = vmatprep.subr.bf16.mxu0 0
    %200 = vmatpush1.bf16.msra.mxu0 %v178
    %201 = vmatprep.subr.bf16.mxu0 0
    %202 = vmatpush1.bf16.msra.mxu0 %v177
    %203 = vmatprep.subr.bf16.mxu0 0
    %204 = vmatpush1.bf16.msra.mxu0 %v176
    %205 = vmatprep.subr.bf16.mxu0 0
    %206 = vmatpush1.bf16.msra.mxu0 %v175
    %207 = vmatprep.subr.bf16.mxu0 0
    %208 = vmatpush2.bf16.msra.mxu0 0
    %209 = vmatprep.subr.bf16.mxu0 0
    %210 = vmatpush2.bf16.msra.mxu0 0
    %211 = vmatprep.subr.bf16.mxu0 0
    %212 = vmatpush2.bf16.msra.mxu0 0
    %213 = vmatprep.subr.bf16.mxu0 0
    %214 = vmatpush2.bf16.msra.mxu0 0
    %215 = vmatprep.subr.bf16.mxu0 0
    %216 = vmatpush2.bf16.msra.mxu0 0
    %217 = vmatprep.subr.bf16.mxu0 0
    %218 = vmatpush2.bf16.msra.mxu0 0
    %219 = vmatprep.subr.bf16.mxu0 0
    %220 = vmatpush2.bf16.msra.mxu0 0
    %221 = vmatprep.subr.bf16.mxu0 0
    %222 = vmatpush2.bf16.msra.mxu0 0
    %223 = vmatprep.mubr.bf16.mxu0 0
    %224 = vmatmul.mubr.bf16.gmra.mxu0 %v119
    %v225 = vpop.f32.mrf.mxu0
    %v226 = vadd.f32 %v141, %v225
    %v227 = vpop.f32.mrf.mxu0
    %v228 = vpop.f32.mrf.mxu0
    %v229 = vpop.f32.mrf.mxu0
    %230 = vdwg.mxu0
    %v231 = vmax.f32 %v226, 0.0
    %v232 = vpack.c.bf16 %v231, %v231
    %v233 = vld [vmem:[%s5] sm:$0xf]
    %v234 = vld [vmem:[%s5 + $0x4] sm:$0xf]
    %v235 = vld [vmem:[%s5 + $0x8] sm:$0xf]
    %v236 = vld [vmem:[%s5 + $0xc] sm:$0xf]
    %v237 = vld [vmem:[%s5 + $0x10] sm:$0xf]
    %v238 = vld [vmem:[%s5 + $0x14] sm:$0xf]
    %v239 = vld [vmem:[%s5 + $0x18] sm:$0xf]
    %v240 = vld [vmem:[%s5 + $0x1c] sm:$0xf]
    %v241 = vld [vmem:[%s6] sm:$0x1]
    %v243 = vlaneseq
    %v244 = vshrl.u32 %v243, 7
    %v245 = vsub.s32 0, %v244
    %v246 = vrot.slane %v241, %v245
    %v256 = vunpack.c.l.b16 %v233
    %v257 = vunpack.c.l.b16 %v234
    %v258 = vunpack.c.l.b16 %v235
    %v259 = vunpack.c.l.b16 %v236
    %v260 = vunpack.c.l.b16 %v237
    %v261 = vunpack.c.l.b16 %v238
    %v262 = vunpack.c.l.b16 %v239
    %v263 = vunpack.c.l.b16 %v240
    %v264 = vpack.c.b16 %v257, %v256
    %v265 = vpack.c.b16 %v259, %v258
    %v266 = vpack.c.b16 %v261, %v260
    %v267 = vpack.c.b16 %v263, %v262
    %vm272 = vcmask 523264
    %v274 = vsel %vm272, %v232, 0
    %276 = vmatprep.subr.bf16.mxu0 0
    %277 = vmatpush1.bf16.msra.mxu0 0
    %278 = vmatprep.subr.bf16.mxu0 0
    %279 = vmatpush1.bf16.msra.mxu0 0
    %280 = vmatprep.subr.bf16.mxu0 0
    %281 = vmatpush1.bf16.msra.mxu0 0
    %282 = vmatprep.subr.bf16.mxu0 0
    %283 = vmatpush1.bf16.msra.mxu0 0
    %284 = vmatprep.subr.bf16.mxu0 0
    %285 = vmatpush1.bf16.msra.mxu0 %v267
    %286 = vmatprep.subr.bf16.mxu0 0
    %287 = vmatpush1.bf16.msra.mxu0 %v266
    %288 = vmatprep.subr.bf16.mxu0 0
    %289 = vmatpush1.bf16.msra.mxu0 %v265
    %290 = vmatprep.subr.bf16.mxu0 0
    %291 = vmatpush1.bf16.msra.mxu0 %v264
    %292 = vmatprep.subr.bf16.mxu0 0
    %293 = vmatpush2.bf16.msra.mxu0 0
    %294 = vmatprep.subr.bf16.mxu0 0
    %295 = vmatpush2.bf16.msra.mxu0 0
    %296 = vmatprep.subr.bf16.mxu0 0
    %297 = vmatpush2.bf16.msra.mxu0 0
    %298 = vmatprep.subr.bf16.mxu0 0
    %299 = vmatpush2.bf16.msra.mxu0 0
    %300 = vmatprep.subr.bf16.mxu0 0
    %301 = vmatpush2.bf16.msra.mxu0 0
    %302 = vmatprep.subr.bf16.mxu0 0
    %303 = vmatpush2.bf16.msra.mxu0 0
    %304 = vmatprep.subr.bf16.mxu0 0
    %305 = vmatpush2.bf16.msra.mxu0 0
    %306 = vmatprep.subr.bf16.mxu0 0
    %307 = vmatpush2.bf16.msra.mxu0 0
    %308 = vmatprep.mubr.bf16.mxu0 0
    %309 = vmatmul.mubr.bf16.gmra.mxu0 %v274
    %v310 = vpop.f32.mrf.mxu0
    %v311 = vadd.f32 %v246, %v310
    %v312 = vpop.f32.mrf.mxu0
    %v313 = vpop.f32.mrf.mxu0
    %v314 = vpop.f32.mrf.mxu0
    %315 = vdwg.mxu0
    %vm316 = vcmask 80896
    %317 = vst.msk [vmem:[#allocation2] sm:$0xff] %vm316, %v311
    // Predicated region
    $region30: #{qnetwork_forward.1} parent=1 // pred_check
      _
    $region31: #{qnetwork_forward.1} parent=1 // pred_check_branch
      %319 = sbr.rel (0) target = $region33
    $region32: #{qnetwork_forward.1} parent=1 // pred_region
      %s321 = ssub.s32 128, 128
      %322 = vsyncadd [#allocation3], %s321
      %s324 = sshll.u32 [#allocation2], 4
      %s325 = int_to_ptr.vmem [resolvable:$true] %s324
      %327 = dma.vmem_to_hbm [thread:$0]  %s325, 128, %s7, [#allocation3]
    $region33: #{qnetwork_forward.1} parent=1 // pred_fallthru
      _
    // Predicated region
    $region34: #{qnetwork_forward.1} parent=1 // pred_check
      _
    $region35: #{qnetwork_forward.1} parent=1 // pred_check_branch
      %329 = sbr.rel (0) target = $region37
    $region36: #{qnetwork_forward.1} parent=1 // pred_region
      %330 = dma.done [#allocation3], 128
    $region37: #{qnetwork_forward.1} parent=1 // pred_fallthru
      _
    %331 = vsyncpa [#allocation3], 1

</llo_original>
